<compile_context>
chip_gen: v5e
topology: v5e:2x2
jax: 0.10.0
libtpu: 0.0.40
codegen_flags: <defaults>
</compile_context>

<pallas_src>
import math

import jax
import jax.numpy as jnp
from jax.experimental import pallas as pl
from jax.experimental.pallas import tpu as pltpu

HIDDEN_SIZE = 32


def _round_up(x, m):
    return ((x + m - 1) // m) * m


def _tunenet_kernel(x_ref, w12_ref, w3_ref, wo_ref, out_ref):
    # x_ref: [TB, F+1] (last column is the constant-1 bias carrier)
    # w12_ref: [F+1, 2H+1], w3_ref: [2H+1, H+1], wo_ref: [H+1, out]
    o12 = jnp.maximum(
        jnp.dot(x_ref[...], w12_ref[...], preferred_element_type=jnp.float32), 0.0)
    o3 = jnp.maximum(
        jnp.dot(o12, w3_ref[...], preferred_element_type=jnp.float32), 0.0)
    out = jnp.tanh(
        jnp.dot(o3, wo_ref[...], preferred_element_type=jnp.float32))
    out_ref[...] = out.astype(out_ref.dtype)


def _pack_weights(params, *, degenerate):
    """Build the augmented weights.

    PyTorch layout in `params`: W [out, in], b [out].
    Returns:
      w12 : [in1+in2+1, 2H+1]  block-diag(W1^T, W2^T), bias row, const-1 col
      w3a : [2H+1,      H+1 ]  W3^T, bias row, const-1 col
      woa : [H+1,       out ]  Wo^T, bias row
    """
    H = HIDDEN_SIZE
    w1, b1 = params["w1"], params["b1"]          # [H, in1], [H]
    w2, b2 = params["w2"], params["b2"]          # [H, in2], [H]
    w3, b3 = params["w3"], params["b3"]          # [H, 2H],  [H]
    wo, bo = params["w_out"], params["b_out"]    # [O, H],   [O]
    in1, in2 = w1.shape[1], w2.shape[1]
    out_size = wo.shape[0]
    F = in1 + in2

    w1t = jnp.zeros((in1, H), jnp.float32) if degenerate else w1.T.astype(jnp.float32)

    w12 = jnp.zeros((F + 1, 2 * H + 1), jnp.float32)
    w12 = w12.at[:in1, :H].set(w1t)
    w12 = w12.at[in1:F, H:2 * H].set(w2.T.astype(jnp.float32))
    w12 = w12.at[F, :H].set(b1.astype(jnp.float32))
    w12 = w12.at[F, H:2 * H].set(b2.astype(jnp.float32))
    w12 = w12.at[F, 2 * H].set(1.0)              # const-1 passthrough column

    w3a = jnp.zeros((2 * H + 1, H + 1), jnp.float32)
    w3a = w3a.at[:2 * H, :H].set(w3.T.astype(jnp.float32))
    w3a = w3a.at[2 * H, :H].set(b3.astype(jnp.float32))
    w3a = w3a.at[2 * H, H].set(1.0)              # const-1 passthrough column

    woa = jnp.zeros((H + 1, out_size), jnp.float32)
    woa = woa.at[:H, :].set(wo.T.astype(jnp.float32))
    woa = woa.at[H, :].set(bo.astype(jnp.float32))
    return w12, w3a, woa


def tunenet_forward(inp, params, *, input_size, degenerate=False, block_b=512):
    """TuneNet forward. params hold PyTorch-layout weights (W: [out,in], b: [out])."""
    del input_size  # split handled entirely by the block-diagonal weight packing
    B, F = inp.shape
    out_size = params["w_out"].shape[0]

    w12, w3a, woa = _pack_weights(params, degenerate=degenerate)

    # Append the constant-1 column that carries every bias through the matmuls.
    x_aug = jnp.concatenate(
        [inp.astype(jnp.float32), jnp.ones((B, 1), jnp.float32)], axis=1)

    # Batch tile: multiple of 8 sublanes, capped at block_b rows (keeps
    # double-buffered tiles far under the 32 MiB scoped-VMEM default on all
    # of v5e/v6e/v7x while reaching ~85% of HBM roofline for big batches).
    TB = min(block_b, _round_up(B, 8))
    Bp = _round_up(B, TB)
    if Bp != B:
        x_aug = jnp.pad(x_aug, ((0, Bp - B), (0, 0)))
    grid = (pl.cdiv(Bp, TB),)

    def _const2d(shape):
        return pl.BlockSpec(shape, lambda i: (0, 0))   # weights stay VMEM-resident

    out_padded = pl.pallas_call(
        _tunenet_kernel,
        out_shape=jax.ShapeDtypeStruct((Bp, out_size), inp.dtype),
        grid=grid,
        in_specs=[
            pl.BlockSpec((TB, F + 1), lambda i: (i, 0)),
            _const2d(w12.shape),
            _const2d(w3a.shape),
            _const2d(woa.shape),
        ],
        out_specs=pl.BlockSpec((TB, out_size), lambda i: (i, 0)),
        compiler_params=pltpu.CompilerParams(
            dimension_semantics=("parallel",)),   # megacore-shards batch on v7x
    )(x_aug, w12, w3a, woa)
    return out_padded[:B]


def _init_linear(key, out_features, in_features):
    # Deterministic init mimicking nn.Linear's uniform(-1/sqrt(in), 1/sqrt(in)).
    kw, kb = jax.random.split(key)
    bound = 1.0 / math.sqrt(in_features)
    w = jax.random.uniform(kw, (out_features, in_features), jnp.float32, -bound, bound)
    b = jax.random.uniform(kb, (out_features,), jnp.float32, -bound, bound)
    return w, b


def _reference_forward(inp, params, *, input_size, degenerate=False):
    x1 = inp[:, :input_size]
    if degenerate:
        x1 = jnp.zeros_like(x1)
    x2 = inp[:, input_size:]
    o1 = jax.nn.relu(x1 @ params["w1"].T + params["b1"])
    o2 = jax.nn.relu(x2 @ params["w2"].T + params["b2"])
    o3 = jax.nn.relu(jnp.concatenate([o1, o2], axis=1) @ params["w3"].T + params["b3"])
    return jnp.tanh(o3 @ params["w_out"].T + params["b_out"])


if __name__ == "__main__":
    input_size = 16
    input_size2 = 12          # asymmetric on purpose (exercises block-diag packing)
    output_size = 4
    H = HIDDEN_SIZE

    key = jax.random.PRNGKey(0)
    k_inp, k_inp2, k1, k2, k3, k4 = jax.random.split(key, 6)

    w1, b1 = _init_linear(k1, H, input_size)
    w2, b2 = _init_linear(k2, H, input_size2)
    w3, b3 = _init_linear(k3, H, 2 * H)
    wo, bo = _init_linear(k4, output_size, H)
    params = {"w1": w1, "b1": b1, "w2": w2, "b2": b2,
              "w3": w3, "b3": b3, "w_out": wo, "b_out": bo}

    # --- small batch, single grid step ---
    batch = 8
    inp = jax.random.normal(k_inp, (batch, input_size + input_size2), jnp.float32)
    out = jax.block_until_ready(
        tunenet_forward(inp, params, input_size=input_size, degenerate=False))
    ref = _reference_forward(inp, params, input_size=input_size, degenerate=False)
    assert out.shape == (batch, output_size)
    assert jnp.allclose(out, ref, atol=1e-5, rtol=1e-5), "mismatch (batch=8)"

    # --- degenerate path (W1 rows zeroed at pack time, b1 still applied) ---
    out_d = jax.block_until_ready(
        tunenet_forward(inp, params, input_size=input_size, degenerate=True))
    ref_d = _reference_forward(inp, params, input_size=input_size, degenerate=True)
    assert jnp.allclose(out_d, ref_d, atol=1e-5, rtol=1e-5), "mismatch (degenerate)"

    # --- ragged batch with a multi-step grid (exercises tiling + padding) ---
    batch2 = 37
    inp2 = jax.random.normal(k_inp2, (batch2, input_size + input_size2), jnp.float32)
    out2 = jax.block_until_ready(
        tunenet_forward(inp2, params, input_size=input_size,
                        degenerate=False, block_b=8))     # grid = (5,)
    ref2 = _reference_forward(inp2, params, input_size=input_size, degenerate=False)
    assert out2.shape == (batch2, output_size)
    assert jnp.allclose(out2, ref2, atol=1e-5, rtol=1e-5), "mismatch (batch=37, tiled)"

    print("KERNEL_OK")
</pallas_src>

<mosaic_0001>
module attributes {stable_mosaic.version = 11 : i64} {
  func.func @_tunenet_kernel(%arg0: i32, %arg1: memref<8x29xf32, #tpu.memory_space<vmem>>, %arg2: memref<29x65xf32, #tpu.memory_space<vmem>>, %arg3: memref<65x33xf32, #tpu.memory_space<vmem>>, %arg4: memref<33x4xf32, #tpu.memory_space<vmem>>, %arg5: memref<8x4xf32, #tpu.memory_space<vmem>>) attributes {dimension_semantics = [#tpu.dimension_semantics<parallel>], iteration_bounds = array<i64: 1>, scalar_prefetch = 0 : i64, scratch_operands = 0 : i64, tpu.core_type = #tpu.core_type<tc>, window_params = [{transform_indices = @transform_0, window_bounds = array<i64: 8, 29>}, {pipeline_mode = #tpu.pipeline_mode<synchronous>, transform_indices = @transform_1, window_bounds = array<i64: 29, 65>}, {pipeline_mode = #tpu.pipeline_mode<synchronous>, transform_indices = @transform_2, window_bounds = array<i64: 65, 33>}, {pipeline_mode = #tpu.pipeline_mode<synchronous>, transform_indices = @transform_3, window_bounds = array<i64: 33, 4>}, {transform_indices = @transform_4, window_bounds = array<i64: 8, 4>}]} {
    %c0 = arith.constant 0 : index
    %c0_0 = arith.constant 0 : index
    %0 = vector.load %arg1[%c0, %c0_0] : memref<8x29xf32, #tpu.memory_space<vmem>>, vector<8x29xf32>
    %c0_1 = arith.constant 0 : index
    %c0_2 = arith.constant 0 : index
    %1 = vector.load %arg2[%c0_1, %c0_2] : memref<29x65xf32, #tpu.memory_space<vmem>>, vector<29x65xf32>
    %cst = arith.constant dense<0.000000e+00> : vector<8x65xf32>
    %2 = tpu.matmul %0, %1, %cst {dimension_numbers = #tpu.dot_dimension_numbers<[1], [0], [0], [1], [0, 0, 1, 1], [], []>} : vector<8x29xf32>, vector<29x65xf32>, vector<8x65xf32> -> vector<8x65xf32>
    %cst_3 = arith.constant 0.000000e+00 : f32
    %3 = vector.broadcast %cst_3 : f32 to vector<8x65xf32>
    %4 = arith.maximumf %2, %3 : vector<8x65xf32>
    %c0_4 = arith.constant 0 : index
    %c0_5 = arith.constant 0 : index
    %5 = vector.load %arg3[%c0_4, %c0_5] : memref<65x33xf32, #tpu.memory_space<vmem>>, vector<65x33xf32>
    %cst_6 = arith.constant dense<0.000000e+00> : vector<8x33xf32>
    %6 = tpu.matmul %4, %5, %cst_6 {dimension_numbers = #tpu.dot_dimension_numbers<[1], [0], [0], [1], [0, 0, 1, 1], [], []>} : vector<8x65xf32>, vector<65x33xf32>, vector<8x33xf32> -> vector<8x33xf32>
    %cst_7 = arith.constant 0.000000e+00 : f32
    %7 = vector.broadcast %cst_7 : f32 to vector<8x33xf32>
    %8 = arith.maximumf %6, %7 : vector<8x33xf32>
    %c0_8 = arith.constant 0 : index
    %c0_9 = arith.constant 0 : index
    %9 = vector.load %arg4[%c0_8, %c0_9] : memref<33x4xf32, #tpu.memory_space<vmem>>, vector<33x4xf32>
    %cst_10 = arith.constant dense<0.000000e+00> : vector<8x4xf32>
    %10 = tpu.matmul %8, %9, %cst_10 {dimension_numbers = #tpu.dot_dimension_numbers<[1], [0], [0], [1], [0, 0, 1, 1], [], []>} : vector<8x33xf32>, vector<33x4xf32>, vector<8x4xf32> -> vector<8x4xf32>
    %11 = math.tanh %10 : vector<8x4xf32>
    %c0_11 = arith.constant 0 : index
    %c0_12 = arith.constant 0 : index
    %12 = vector.load %arg5[%c0_11, %c0_12] : memref<8x4xf32, #tpu.memory_space<vmem>>, vector<8x4xf32>
    tpu.vector_store %arg5[%c0_11, %c0_12], %11 {strides = array<i32>} : memref<8x4xf32, #tpu.memory_space<vmem>>, vector<8x4xf32>,
    return
  }
  func.func @transform_0(%arg0: i32) -> (i32, i32) {
    %c0_i32 = arith.constant 0 : i32
    %c0_i32_0 = arith.constant 0 : i32
    return %arg0, %c0_i32 : i32, i32
  }
  func.func @transform_1(%arg0: i32) -> (i32, i32) {
    %c0_i32 = arith.constant 0 : i32
    %c0_i32_0 = arith.constant 0 : i32
    %c0_i32_1 = arith.constant 0 : i32
    return %c0_i32, %c0_i32_0 : i32, i32
  }
  func.func @transform_2(%arg0: i32) -> (i32, i32) {
    %c0_i32 = arith.constant 0 : i32
    %c0_i32_0 = arith.constant 0 : i32
    %c0_i32_1 = arith.constant 0 : i32
    return %c0_i32, %c0_i32_0 : i32, i32
  }
  func.func @transform_3(%arg0: i32) -> (i32, i32) {
    %c0_i32 = arith.constant 0 : i32
    %c0_i32_0 = arith.constant 0 : i32
    %c0_i32_1 = arith.constant 0 : i32
    return %c0_i32, %c0_i32_0 : i32, i32
  }
  func.func @transform_4(%arg0: i32) -> (i32, i32) {
    %c0_i32 = arith.constant 0 : i32
    %c0_i32_0 = arith.constant 0 : i32
    return %arg0, %c0_i32 : i32, i32
  }
}

</mosaic_0001>

<llo_original>
// kernel: tpu_custom_call.1
$region0: #{tpu_custom_call.1}
  #allocation0 [shape = 'u32[]', space=smem, size = 0x4, offset = 0x4, fixed_abs, tag = 'smem constant byte address 0x4 - core index']
  #allocation1 [shape = 'u32[72,128]{1,0:T(1,128)}', space=vmem, size = 0x9000, scoped, tag = 'internal scratch']
  %s0 = inlined_call_operand.vmem [shape: f32[8,29], index: 0, kind: input, shape index: {}]
  %s1 = inlined_call_operand.vmem [shape: f32[29,65], index: 1, kind: input, shape index: {}]
  %s2 = inlined_call_operand.vmem [shape: f32[65,33], index: 2, kind: input, shape index: {}]
  %s3 = inlined_call_operand.vmem [shape: f32[33,4], index: 3, kind: input, shape index: {}]
  %s4 = inlined_call_operand.vmem [shape: f32[8,4], index: 4, kind: output, shape index: {}]
  %s5 = sld [smem:[#allocation0]]
  $region26: #{tpu_custom_call.1} parent=0
    _
  %s7 = ssub.s32 1, %s5
  %s8 = scalar_select 0, %s7, %s5
  // Predicated region
  $region2: #{tpu_custom_call.1} parent=0 // pred_check
    _
  $region3: #{tpu_custom_call.1} parent=0 // pred_check_branch
    %10 = sbr.rel (0) target = $region5
  $region4: #{tpu_custom_call.1} parent=0 // pred_region
    _
  $region5: #{tpu_custom_call.1} parent=0 // pred_fallthru
    _
  // Predicated region
  $region6: #{tpu_custom_call.1} parent=0 // pred_check
    _
  $region7: #{tpu_custom_call.1} parent=0 // pred_check_branch
    %12 = sbr.rel (0) target = $region9
  $region8: #{tpu_custom_call.1} parent=0 // pred_region
    _
  $region9: #{tpu_custom_call.1} parent=0 // pred_fallthru
    _
  // Predicated region
  $region10: #{tpu_custom_call.1} parent=0 // pred_check
    _
  $region11: #{tpu_custom_call.1} parent=0 // pred_check_branch
    %14 = sbr.rel (0) target = $region13
  $region12: #{tpu_custom_call.1} parent=0 // pred_region
    _
  $region13: #{tpu_custom_call.1} parent=0 // pred_fallthru
    _
  // Predicated region
  $region14: #{tpu_custom_call.1} parent=0 // pred_check
    _
  $region15: #{tpu_custom_call.1} parent=0 // pred_check_branch
    %16 = sbr.rel (0) target = $region17
  $region16: #{tpu_custom_call.1} parent=0 // pred_region
    _
  $region17: #{tpu_custom_call.1} parent=0 // pred_fallthru
    _
  %v17 = vld [vmem:[%s0] sm:$0xff]
  %v18 = vld [vmem:[%s1] sm:$0xff]
  %v19 = vld [vmem:[%s1 + $0x8] sm:$0xff]
  %v20 = vld [vmem:[%s1 + $0x10] sm:$0xff]
  %v21 = vld [vmem:[%s1 + $0x18] sm:$0x1f]
  %vm22 = vcmask 236544
  %v24 = vsel %vm22, %v17, 0
  %vm26 = vcmask 1044480
  %v28 = vsel %vm26, %v21, 0
  %30 = vmatpush.msra.mxu0 0.0
  %31 = vmatpush.msra.mxu0 0.0
  %32 = vmatpush.msra.mxu0 0.0
  %33 = vmatpush.msra.mxu0 0.0
  %34 = vmatpush.msra.mxu0 0.0
  %35 = vmatpush.msra.mxu0 0.0
  %36 = vmatpush.msra.mxu0 0.0
  %37 = vmatpush.msra.mxu0 0.0
  %38 = vmatpush.msra.mxu0 0.0
  %39 = vmatpush.msra.mxu0 0.0
  %40 = vmatpush.msra.mxu0 0.0
  %41 = vmatpush.msra.mxu0 0.0
  %42 = vmatpush.msra.mxu0 %v28
  %43 = vmatpush.msra.mxu0 %v20
  %44 = vmatpush.msra.mxu0 %v19
  %45 = vmatpush.msra.mxu0 %v18
  %46 = vmatmul.f32.gmra.mxu0 %v24
  %v47 = vpop.f32.mrf.mxu0
  %v48 = vadd.f32 0.0, %v47
  %49 = vdwg.mxu0
  %v50 = vmax.f32 %v48, 0.0
  %v51 = vld [vmem:[%s2] sm:$0xff]
  %v52 = vld [vmem:[%s2 + $0x8] sm:$0xff]
  %v53 = vld [vmem:[%s2 + $0x10] sm:$0xff]
  %v54 = vld [vmem:[%s2 + $0x18] sm:$0xff]
  %v55 = vld [vmem:[%s2 + $0x20] sm:$0xff]
  %v56 = vld [vmem:[%s2 + $0x28] sm:$0xff]
  %v57 = vld [vmem:[%s2 + $0x30] sm:$0xff]
  %v58 = vld [vmem:[%s2 + $0x38] sm:$0xff]
  %v59 = vld [vmem:[%s2 + $0x40] sm:$0x1]
  %vm60 = vcmask 531456
  %v62 = vsel %vm60, %v50, 0
  %vm64 = vcmask 1040384
  %v66 = vsel %vm64, %v59, 0
  %68 = vmatpush.msra.mxu0 0.0
  %69 = vmatpush.msra.mxu0 0.0
  %70 = vmatpush.msra.mxu0 0.0
  %71 = vmatpush.msra.mxu0 0.0
  %72 = vmatpush.msra.mxu0 0.0
  %73 = vmatpush.msra.mxu0 0.0
  %74 = vmatpush.msra.mxu0 0.0
  %75 = vmatpush.msra.mxu0 %v66
  %76 = vmatpush.msra.mxu0 %v58
  %77 = vmatpush.msra.mxu0 %v57
  %78 = vmatpush.msra.mxu0 %v56
  %79 = vmatpush.msra.mxu0 %v55
  %80 = vmatpush.msra.mxu0 %v54
  %81 = vmatpush.msra.mxu0 %v53
  %82 = vmatpush.msra.mxu0 %v52
  %83 = vmatpush.msra.mxu0 %v51
  %84 = vmatmul.f32.gmra.mxu0 %v62
  %v85 = vpop.f32.mrf.mxu0
  %v86 = vadd.f32 0.0, %v85
  %87 = vdwg.mxu0
  %v88 = vmax.f32 %v86, 0.0
  %v89 = vld [vmem:[%s3] sm:$0xff]
  %v90 = vld [vmem:[%s3 + $0x8] sm:$0xff]
  %v91 = vld [vmem:[%s3 + $0x10] sm:$0xff]
  %v92 = vld [vmem:[%s3 + $0x18] sm:$0xff]
  %v93 = vld [vmem:[%s3 + $0x20] sm:$0x1]
  %vm94 = vcmask 269312
  %v96 = vsel %vm94, %v88, 0
  %v99 = vsel %vm64, %v93, 0
  %101 = vmatpush.msra.mxu0 0.0
  %102 = vmatpush.msra.mxu0 0.0
  %103 = vmatpush.msra.mxu0 0.0
  %104 = vmatpush.msra.mxu0 0.0
  %105 = vmatpush.msra.mxu0 0.0
  %106 = vmatpush.msra.mxu0 0.0
  %107 = vmatpush.msra.mxu0 0.0
  %108 = vmatpush.msra.mxu0 0.0
  %109 = vmatpush.msra.mxu0 0.0
  %110 = vmatpush.msra.mxu0 0.0
  %111 = vmatpush.msra.mxu0 0.0
  %112 = vmatpush.msra.mxu0 %v99
  %113 = vmatpush.msra.mxu0 %v92
  %114 = vmatpush.msra.mxu0 %v91
  %115 = vmatpush.msra.mxu0 %v90
  %116 = vmatpush.msra.mxu0 %v89
  %117 = vmatmul.f32.gmra.mxu0 %v96
  %v118 = vpop.f32.mrf.mxu0
  %v119 = vadd.f32 0.0, %v118
  %120 = vdwg.mxu0
  %v121 = vtanh.pop %v119
  %vm122 = vcmask 31744
  %123 = vst.msk [vmem:[%s4] sm:$0xff] %vm122, %v121
  // Predicated region
  $region18: #{tpu_custom_call.1} parent=0 // pred_check
    _
  $region19: #{tpu_custom_call.1} parent=0 // pred_check_branch
    %125 = sbr.rel (0) target = $region21
  $region20: #{tpu_custom_call.1} parent=0 // pred_region
    _
  $region21: #{tpu_custom_call.1} parent=0 // pred_fallthru
    _
  // Predicated region
  $region22: #{tpu_custom_call.1} parent=0 // pred_check
    _
  $region23: #{tpu_custom_call.1} parent=0 // pred_check_branch
    %127 = sbr.rel (0) target = $region25
  $region24: #{tpu_custom_call.1} parent=0 // pred_region
    _
  $region25: #{tpu_custom_call.1} parent=0 // pred_fallthru
    _

</llo_original>
